<compile_context>
chip_gen: v5e
topology: v5e:2x2
jax: 0.10.0
libtpu: 0.0.40
codegen_flags: <defaults>
</compile_context>

<pallas_src>
import functools

import jax
import jax.numpy as jnp
from jax.experimental import pallas as pl
from jax.experimental.pallas import tpu as pltpu


def _policy_kernel(x_ref, u_ref, w1_ref, b1_ref, w2_ref, b2_ref, w3_ref, b3_ref,
                   probs_ref, action_ref, logp_ref, *, num_outputs):
    # ---- MLP: Linear -> ReLU -> Linear -> ReLU -> Linear -------------------
    h1 = jnp.dot(x_ref[...], w1_ref[...], preferred_element_type=jnp.float32)
    h1 = jnp.maximum(h1 + b1_ref[...], 0.0)          # b: (1, H) broadcasts over rows

    h2 = jnp.dot(h1, w2_ref[...], preferred_element_type=jnp.float32)
    h2 = jnp.maximum(h2 + b2_ref[...], 0.0)

    # Output layer is lane-padded to a multiple of 128; padded lanes carry a
    # -1e30 bias so they vanish under softmax (exp underflows to exactly 0).
    logits = jnp.dot(h2, w3_ref[...], preferred_element_type=jnp.float32) + b3_ref[...]

    # ---- numerically-stable softmax over lanes ------------------------------
    m = jnp.max(logits, axis=-1, keepdims=True)
    z = logits - m
    e = jnp.exp(z)
    denom = jnp.sum(e, axis=-1, keepdims=True)
    probs = e / denom                                  # exact: keep 1e-5 tolerance
    probs_ref[...] = probs.astype(probs_ref.dtype)

    # ---- fused Categorical: sample + log_prob -------------------------------
    tile_b, out_pad = probs.shape
    u = u_ref[...]                                     # (tile_b, 1) uniforms in [0, 1)

    # Inclusive CDF across lanes via a tiny MXU matmul with an upper-triangular
    # ones matrix (avoids relying on a lane-scan lowering).
    k_id = jax.lax.broadcasted_iota(jnp.int32, (out_pad, out_pad), 0)
    j_id = jax.lax.broadcasted_iota(jnp.int32, (out_pad, out_pad), 1)
    tri = (k_id <= j_id).astype(jnp.float32)
    cdf = jnp.dot(probs, tri, preferred_element_type=jnp.float32)

    # Inverse-CDF sample: smallest j with cdf[j] > u  ==  #{j : cdf[j] <= u}.
    # (Padded lanes have cdf == 1 > u, so they never inflate the count.)
    count = jnp.sum((cdf <= u).astype(jnp.float32), axis=-1, keepdims=True)
    action = count.astype(jnp.int32)
    action = jnp.minimum(action, num_outputs - 1)      # guard fp round-off at u ~ 1
    action_ref[...] = action

    # log_prob of the sampled action via log-softmax + one-hot select.
    lane = jax.lax.broadcasted_iota(jnp.int32, (tile_b, out_pad), 1)
    logp_all = z - jnp.log(denom)
    logp_ref[...] = jnp.sum(jnp.where(lane == action, logp_all, 0.0),
                            axis=-1, keepdims=True)


def _round_up(n, m):
    return ((n + m - 1) // m) * m


def vpg_policy_net_forward(x, params, seed=0, tile_b_max=512):
    """Fused forward of vpg_policy_net.

    Returns (probs, action, log_prob):
      probs    (batch, num_outputs) — the Categorical's probability tensor
      action   (batch, 1) int32     — fused Categorical(probs).sample()
      log_prob (batch, 1) float32   — fused Categorical(probs).log_prob(action)
    """
    w1, b1, w2, b2, w3, b3 = params
    batch, num_inputs = x.shape
    hidden = w1.shape[1]
    num_outputs = w3.shape[1]

    # ---- lane-pad the output layer so the probs store is 128-lane dense -----
    out_pad = 128 * pl.cdiv(num_outputs, 128)
    if out_pad != num_outputs:
        w3 = jnp.zeros((hidden, out_pad), w3.dtype).at[:, :num_outputs].set(w3)
        b3 = jnp.full((1, out_pad), -1e30, b3.dtype).at[:, :num_outputs].set(b3)

    # ---- batch tiling: large tiles, multiple of 8, pad remainder rows -------
    tile_b = min(tile_b_max, _round_up(batch, 8))
    batch_pad = _round_up(batch, tile_b)
    if batch_pad != batch:
        x = jnp.zeros((batch_pad, num_inputs), x.dtype).at[:batch, :].set(x)
    grid = (batch_pad // tile_b,)

    # Per-row uniforms for the fused Categorical sample (generated on-host/XLA;
    # no in-kernel PRNG so the kernel lowers on TPU and in interpret mode).
    u = jax.random.uniform(jax.random.PRNGKey(seed), (batch_pad, 1),
                           dtype=jnp.float32)

    kernel = functools.partial(_policy_kernel, num_outputs=num_outputs)

    # Batch-tiled specs for x / u / outputs; constant index_maps keep weights
    # and biases resident in VMEM across all grid steps (no re-DMA).
    def row_spec(ncol):
        return pl.BlockSpec((tile_b, ncol), lambda i: (i, 0))

    def const_spec(arr):
        return pl.BlockSpec(arr.shape, lambda i: (0, 0))

    probs, action, logp = pl.pallas_call(
        kernel,
        out_shape=(
            jax.ShapeDtypeStruct((batch_pad, out_pad), jnp.float32),
            jax.ShapeDtypeStruct((batch_pad, 1), jnp.int32),
            jax.ShapeDtypeStruct((batch_pad, 1), jnp.float32),
        ),
        grid=grid,
        in_specs=[
            row_spec(num_inputs),
            row_spec(1),
            const_spec(w1), const_spec(b1),
            const_spec(w2), const_spec(b2),
            const_spec(w3), const_spec(b3),
        ],
        out_specs=(row_spec(out_pad), row_spec(1), row_spec(1)),
        compiler_params=pltpu.CompilerParams(
            dimension_semantics=("parallel",)),   # v7x: shard batch tiles over 2 TCs
    )(x, u, w1, b1, w2, b2, w3, b3)

    return (probs[:batch, :num_outputs], action[:batch, :], logp[:batch, :])


def init_params(key, num_inputs, num_outputs, hidden_size):
    """Deterministic PyTorch-Linear-style init (uniform +/- 1/sqrt(fan_in)).
    Weights are stored as (in, out) — i.e. already transposed vs. torch."""
    ks = jax.random.split(key, 6)

    def lin(kw, kb, fan_in, fan_out):
        bound = 1.0 / jnp.sqrt(fan_in)
        w = jax.random.uniform(kw, (fan_in, fan_out), jnp.float32, -bound, bound)
        b = jax.random.uniform(kb, (1, fan_out), jnp.float32, -bound, bound)
        return w, b

    w1, b1 = lin(ks[0], ks[1], num_inputs, hidden_size)
    w2, b2 = lin(ks[2], ks[3], hidden_size, hidden_size)
    w3, b3 = lin(ks[4], ks[5], hidden_size, num_outputs)
    return (w1, b1, w2, b2, w3, b3)


if __name__ == "__main__":
    num_inputs, num_outputs, hidden_size = 4, 2, 32
    batch = 2

    key = jax.random.PRNGKey(0)
    k_x, k_p = jax.random.split(key)
    x = jax.random.normal(k_x, (batch, num_inputs), dtype=jnp.float32)
    params = init_params(k_p, num_inputs, num_outputs, hidden_size)

    probs, action, logp = vpg_policy_net_forward(x, params, seed=0)
    jax.block_until_ready((probs, action, logp))

    # Reference check in plain JAX.
    w1, b1, w2, b2, w3, b3 = params
    h1 = jnp.maximum(x @ w1 + b1, 0.0)
    h2 = jnp.maximum(h1 @ w2 + b2, 0.0)
    logits = h2 @ w3 + b3
    ref = jax.nn.softmax(logits, axis=1)

    assert probs.shape == (batch, num_outputs)
    assert jnp.allclose(probs, ref, atol=1e-5, rtol=1e-5), (probs, ref)
    assert jnp.allclose(jnp.sum(probs, axis=1), 1.0, atol=1e-5)

    # Fused Categorical outputs: action is a valid class index and log_prob
    # matches log(probs[action]) of the reference distribution.
    assert bool(jnp.all((action >= 0) & (action < num_outputs)))
    ref_logp = jnp.log(jnp.take_along_axis(ref, action, axis=1))
    assert jnp.allclose(logp, ref_logp, atol=1e-4, rtol=1e-4), (logp, ref_logp)

    # TODO(synk): the torch.distributions.Categorical *object* (entropy(),
    # arbitrary log_prob queries, etc.) has no Pallas equivalent; the kernel
    # returns probs plus a fused sample()/log_prob(sample) instead.
    print("KERNEL_OK")
</pallas_src>

<mosaic_0001>
module attributes {stable_mosaic.version = 11 : i64} {
  func.func @_policy_kernel(%arg0: i32, %arg1: memref<8x4xf32, #tpu.memory_space<vmem>>, %arg2: memref<8x1xf32, #tpu.memory_space<vmem>>, %arg3: memref<4x32xf32, #tpu.memory_space<vmem>>, %arg4: memref<1x32xf32, #tpu.memory_space<vmem>>, %arg5: memref<32x32xf32, #tpu.memory_space<vmem>>, %arg6: memref<1x32xf32, #tpu.memory_space<vmem>>, %arg7: memref<32x128xf32, #tpu.memory_space<vmem>>, %arg8: memref<1x128xf32, #tpu.memory_space<vmem>>, %arg9: memref<8x128xf32, #tpu.memory_space<vmem>>, %arg10: memref<8x1xi32, #tpu.memory_space<vmem>>, %arg11: memref<8x1xf32, #tpu.memory_space<vmem>>) attributes {dimension_semantics = [#tpu.dimension_semantics<parallel>], iteration_bounds = array<i64: 1>, scalar_prefetch = 0 : i64, scratch_operands = 0 : i64, tpu.core_type = #tpu.core_type<tc>, window_params = [{transform_indices = @transform_0, window_bounds = array<i64: 8, 4>}, {transform_indices = @transform_1, window_bounds = array<i64: 8, 1>}, {pipeline_mode = #tpu.pipeline_mode<synchronous>, transform_indices = @transform_2, window_bounds = array<i64: 4, 32>}, {pipeline_mode = #tpu.pipeline_mode<synchronous>, transform_indices = @transform_3, window_bounds = array<i64: 1, 32>}, {pipeline_mode = #tpu.pipeline_mode<synchronous>, transform_indices = @transform_4, window_bounds = array<i64: 32, 32>}, {pipeline_mode = #tpu.pipeline_mode<synchronous>, transform_indices = @transform_5, window_bounds = array<i64: 1, 32>}, {pipeline_mode = #tpu.pipeline_mode<synchronous>, transform_indices = @transform_6, window_bounds = array<i64: 32, 128>}, {pipeline_mode = #tpu.pipeline_mode<synchronous>, transform_indices = @transform_7, window_bounds = array<i64: 1, 128>}, {transform_indices = @transform_8, window_bounds = array<i64: 8, 128>}, {transform_indices = @transform_9, window_bounds = array<i64: 8, 1>}, {transform_indices = @transform_10, window_bounds = array<i64: 8, 1>}]} {
    %c0 = arith.constant 0 : index
    %c0_0 = arith.constant 0 : index
    %0 = vector.load %arg1[%c0, %c0_0] : memref<8x4xf32, #tpu.memory_space<vmem>>, vector<8x4xf32>
    %c0_1 = arith.constant 0 : index
    %c0_2 = arith.constant 0 : index
    %1 = vector.load %arg3[%c0_1, %c0_2] : memref<4x32xf32, #tpu.memory_space<vmem>>, vector<4x32xf32>
    %cst = arith.constant dense<0.000000e+00> : vector<8x32xf32>
    %2 = tpu.matmul %0, %1, %cst {dimension_numbers = #tpu.dot_dimension_numbers<[1], [0], [0], [1], [0, 0, 1, 1], [], []>} : vector<8x4xf32>, vector<4x32xf32>, vector<8x32xf32> -> vector<8x32xf32>
    %c0_3 = arith.constant 0 : index
    %c0_4 = arith.constant 0 : index
    %3 = vector.load %arg4[%c0_3, %c0_4] : memref<1x32xf32, #tpu.memory_space<vmem>>, vector<1x32xf32>
    %4 = vector.broadcast %3 : vector<1x32xf32> to vector<8x32xf32>
    %5 = arith.addf %2, %4 : vector<8x32xf32>
    %cst_5 = arith.constant 0.000000e+00 : f32
    %6 = vector.broadcast %cst_5 : f32 to vector<8x32xf32>
    %7 = arith.maximumf %5, %6 : vector<8x32xf32>
    %c0_6 = arith.constant 0 : index
    %c0_7 = arith.constant 0 : index
    %8 = vector.load %arg5[%c0_6, %c0_7] : memref<32x32xf32, #tpu.memory_space<vmem>>, vector<32x32xf32>
    %cst_8 = arith.constant dense<0.000000e+00> : vector<8x32xf32>
    %9 = tpu.matmul %7, %8, %cst_8 {dimension_numbers = #tpu.dot_dimension_numbers<[1], [0], [0], [1], [0, 0, 1, 1], [], []>} : vector<8x32xf32>, vector<32x32xf32>, vector<8x32xf32> -> vector<8x32xf32>
    %c0_9 = arith.constant 0 : index
    %c0_10 = arith.constant 0 : index
    %10 = vector.load %arg6[%c0_9, %c0_10] : memref<1x32xf32, #tpu.memory_space<vmem>>, vector<1x32xf32>
    %11 = vector.broadcast %10 : vector<1x32xf32> to vector<8x32xf32>
    %12 = arith.addf %9, %11 : vector<8x32xf32>
    %cst_11 = arith.constant 0.000000e+00 : f32
    %13 = vector.broadcast %cst_11 : f32 to vector<8x32xf32>
    %14 = arith.maximumf %12, %13 : vector<8x32xf32>
    %c0_12 = arith.constant 0 : index
    %c0_13 = arith.constant 0 : index
    %15 = vector.load %arg7[%c0_12, %c0_13] : memref<32x128xf32, #tpu.memory_space<vmem>>, vector<32x128xf32>
    %cst_14 = arith.constant dense<0.000000e+00> : vector<8x128xf32>
    %16 = tpu.matmul %14, %15, %cst_14 {dimension_numbers = #tpu.dot_dimension_numbers<[1], [0], [0], [1], [0, 0, 1, 1], [], []>} : vector<8x32xf32>, vector<32x128xf32>, vector<8x128xf32> -> vector<8x128xf32>
    %c0_15 = arith.constant 0 : index
    %c0_16 = arith.constant 0 : index
    %17 = vector.load %arg8[%c0_15, %c0_16] : memref<1x128xf32, #tpu.memory_space<vmem>>, vector<1x128xf32>
    %18 = vector.broadcast %17 : vector<1x128xf32> to vector<8x128xf32>
    %19 = arith.addf %16, %18 : vector<8x128xf32>
    %cst_17 = arith.constant dense<0xFF800000> : vector<8xf32>
    %20 = vector.multi_reduction <maximumf>, %19, %cst_17 [1] : vector<8x128xf32> to vector<8xf32>
    %21 = vector.shape_cast %20 : vector<8xf32> to vector<8x1xf32>
    %22 = vector.broadcast %21 : vector<8x1xf32> to vector<8x128xf32>
    %23 = arith.subf %19, %22 : vector<8x128xf32>
    %24 = math.exp %23 : vector<8x128xf32>
    %cst_18 = arith.constant dense<0.000000e+00> : vector<8xf32>
    %25 = vector.multi_reduction <add>, %24, %cst_18 [1] : vector<8x128xf32> to vector<8xf32>
    %26 = vector.shape_cast %25 : vector<8xf32> to vector<8x1xf32>
    %27 = vector.broadcast %26 : vector<8x1xf32> to vector<8x128xf32>
    %28 = arith.divf %24, %27 : vector<8x128xf32>
    %c0_19 = arith.constant 0 : index
    %c0_20 = arith.constant 0 : index
    %29 = vector.load %arg9[%c0_19, %c0_20] : memref<8x128xf32, #tpu.memory_space<vmem>>, vector<8x128xf32>
    tpu.vector_store %arg9[%c0_19, %c0_20], %28 {strides = array<i32>} : memref<8x128xf32, #tpu.memory_space<vmem>>, vector<8x128xf32>,
    %c0_21 = arith.constant 0 : index
    %c0_22 = arith.constant 0 : index
    %30 = vector.load %arg2[%c0_21, %c0_22] : memref<8x1xf32, #tpu.memory_space<vmem>>, vector<8x1xf32>
    %31 = tpu.iota {dimensions = array<i32: 0>} : vector<128x128xi32>
    %32 = tpu.iota {dimensions = array<i32: 1>} : vector<128x128xi32>
    %33 = arith.cmpi sle, %31, %32 : vector<128x128xi32>
    %34 = arith.extui %33 : vector<128x128xi1> to vector<128x128xi32>
    %35 = arith.sitofp %34 : vector<128x128xi32> to vector<128x128xf32>
    %cst_23 = arith.constant dense<0.000000e+00> : vector<8x128xf32>
    %36 = tpu.matmul %28, %35, %cst_23 {dimension_numbers = #tpu.dot_dimension_numbers<[1], [0], [0], [1], [0, 0, 1, 1], [], []>} : vector<8x128xf32>, vector<128x128xf32>, vector<8x128xf32> -> vector<8x128xf32>
    %37 = vector.broadcast %30 : vector<8x1xf32> to vector<8x128xf32>
    %38 = arith.cmpf ole, %36, %37 : vector<8x128xf32>
    %39 = arith.extui %38 : vector<8x128xi1> to vector<8x128xi32>
    %40 = arith.sitofp %39 : vector<8x128xi32> to vector<8x128xf32>
    %cst_24 = arith.constant dense<0.000000e+00> : vector<8xf32>
    %41 = vector.multi_reduction <add>, %40, %cst_24 [1] : vector<8x128xf32> to vector<8xf32>
    %42 = vector.shape_cast %41 : vector<8xf32> to vector<8x1xf32>
    %43 = arith.fptosi %42 : vector<8x1xf32> to vector<8x1xi32>
    %c1_i32 = arith.constant 1 : i32
    %44 = vector.broadcast %c1_i32 : i32 to vector<8x1xi32>
    %45 = arith.minsi %43, %44 : vector<8x1xi32>
    %c0_25 = arith.constant 0 : index
    %c0_26 = arith.constant 0 : index
    %46 = vector.load %arg10[%c0_25, %c0_26] : memref<8x1xi32, #tpu.memory_space<vmem>>, vector<8x1xi32>
    tpu.vector_store %arg10[%c0_25, %c0_26], %45 {strides = array<i32>} : memref<8x1xi32, #tpu.memory_space<vmem>>, vector<8x1xi32>,
    %47 = tpu.iota {dimensions = array<i32: 1>} : vector<8x128xi32>
    %48 = math.log %26 : vector<8x1xf32>
    %49 = vector.broadcast %48 : vector<8x1xf32> to vector<8x128xf32>
    %50 = arith.subf %23, %49 : vector<8x128xf32>
    %51 = vector.broadcast %45 : vector<8x1xi32> to vector<8x128xi32>
    %52 = arith.cmpi eq, %47, %51 : vector<8x128xi32>
    %cst_27 = arith.constant 0.000000e+00 : f32
    %53 = vector.broadcast %cst_27 : f32 to vector<8x128xf32>
    %54 = arith.select %52, %50, %53 : vector<8x128xi1>, vector<8x128xf32>
    %cst_28 = arith.constant dense<0.000000e+00> : vector<8xf32>
    %55 = vector.multi_reduction <add>, %54, %cst_28 [1] : vector<8x128xf32> to vector<8xf32>
    %56 = vector.shape_cast %55 : vector<8xf32> to vector<8x1xf32>
    %c0_29 = arith.constant 0 : index
    %c0_30 = arith.constant 0 : index
    %57 = vector.load %arg11[%c0_29, %c0_30] : memref<8x1xf32, #tpu.memory_space<vmem>>, vector<8x1xf32>
    tpu.vector_store %arg11[%c0_29, %c0_30], %56 {strides = array<i32>} : memref<8x1xf32, #tpu.memory_space<vmem>>, vector<8x1xf32>,
    return
  }
  func.func @transform_0(%arg0: i32) -> (i32, i32) {
    %c0_i32 = arith.constant 0 : i32
    %c0_i32_0 = arith.constant 0 : i32
    return %arg0, %c0_i32 : i32, i32
  }
  func.func @transform_1(%arg0: i32) -> (i32, i32) {
    %c0_i32 = arith.constant 0 : i32
    %c0_i32_0 = arith.constant 0 : i32
    return %arg0, %c0_i32 : i32, i32
  }
  func.func @transform_2(%arg0: i32) -> (i32, i32) {
    %c0_i32 = arith.constant 0 : i32
    %c0_i32_0 = arith.constant 0 : i32
    %c0_i32_1 = arith.constant 0 : i32
    return %c0_i32, %c0_i32_0 : i32, i32
  }
  func.func @transform_3(%arg0: i32) -> (i32, i32) {
    %c0_i32 = arith.constant 0 : i32
    %c0_i32_0 = arith.constant 0 : i32
    %c0_i32_1 = arith.constant 0 : i32
    return %c0_i32, %c0_i32_0 : i32, i32
  }
  func.func @transform_4(%arg0: i32) -> (i32, i32) {
    %c0_i32 = arith.constant 0 : i32
    %c0_i32_0 = arith.constant 0 : i32
    %c0_i32_1 = arith.constant 0 : i32
    return %c0_i32, %c0_i32_0 : i32, i32
  }
  func.func @transform_5(%arg0: i32) -> (i32, i32) {
    %c0_i32 = arith.constant 0 : i32
    %c0_i32_0 = arith.constant 0 : i32
    %c0_i32_1 = arith.constant 0 : i32
    return %c0_i32, %c0_i32_0 : i32, i32
  }
  func.func @transform_6(%arg0: i32) -> (i32, i32) {
    %c0_i32 = arith.constant 0 : i32
    %c0_i32_0 = arith.constant 0 : i32
    %c0_i32_1 = arith.constant 0 : i32
    return %c0_i32, %c0_i32_0 : i32, i32
  }
  func.func @transform_7(%arg0: i32) -> (i32, i32) {
    %c0_i32 = arith.constant 0 : i32
    %c0_i32_0 = arith.constant 0 : i32
    %c0_i32_1 = arith.constant 0 : i32
    return %c0_i32, %c0_i32_0 : i32, i32
  }
  func.func @transform_8(%arg0: i32) -> (i32, i32) {
    %c0_i32 = arith.constant 0 : i32
    %c0_i32_0 = arith.constant 0 : i32
    return %arg0, %c0_i32 : i32, i32
  }
  func.func @transform_9(%arg0: i32) -> (i32, i32) {
    %c0_i32 = arith.constant 0 : i32
    %c0_i32_0 = arith.constant 0 : i32
    return %arg0, %c0_i32 : i32, i32
  }
  func.func @transform_10(%arg0: i32) -> (i32, i32) {
    %c0_i32 = arith.constant 0 : i32
    %c0_i32_0 = arith.constant 0 : i32
    return %arg0, %c0_i32 : i32, i32
  }
}

</mosaic_0001>

<llo_original>
// kernel: tpu_custom_call.1
$region0: #{tpu_custom_call.1}
  #allocation0 [shape = 'u32[]', space=smem, size = 0x4, offset = 0x4, fixed_abs, tag = 'smem constant byte address 0x4 - core index']
  #allocation1 [shape = 'u32[72,128]{1,0:T(1,128)}', space=vmem, size = 0x9000, scoped, tag = 'internal scratch']
  %s0 = inlined_call_operand.vmem [shape: f32[8,4], index: 0, kind: input, shape index: {}]
  %s1 = inlined_call_operand.vmem [shape: f32[8,1], index: 1, kind: input, shape index: {}]
  %s2 = inlined_call_operand.vmem [shape: f32[4,32], index: 2, kind: input, shape index: {}]
  %s3 = inlined_call_operand.vmem [shape: f32[1,32], index: 3, kind: input, shape index: {}]
  %s4 = inlined_call_operand.hbm [shape: f32[32,32], index: 4, kind: input, shape index: {}]
  %s5 = inlined_call_operand.vmem [shape: f32[1,32], index: 5, kind: input, shape index: {}]
  %s6 = inlined_call_operand.hbm [shape: f32[32,128], index: 6, kind: input, shape index: {}]
  %s7 = inlined_call_operand.vmem [shape: f32[1,128], index: 7, kind: input, shape index: {}]
  %s8 = inlined_call_operand.hbm [shape: f32[8,128], index: 8, kind: output, shape index: {0}]
  %s9 = inlined_call_operand.vmem [shape: s32[8,1], index: 9, kind: output, shape index: {1}]
  %s10 = inlined_call_operand.vmem [shape: f32[8,1], index: 10, kind: output, shape index: {2}]
  %11 = xla_tuple %s8, %s9, %s10
  %s12 = sld [smem:[#allocation0]]
  $region66: #{tpu_custom_call.1} parent=0
    _
  %s14 = ssub.s32 1, %s12
  %s15 = scalar_select 0, %s14, %s12
  $region1: #{tpu_custom_call.1} parent=0
    #allocation2 [shape = 'u8[16384]{0}', space=vmem, size = 0x4000, scoped, tag = 'input window, operand 4, single buffered']
    #allocation3 [shape = 's32[1]{0}', space=sflag, size = 0x4, scoped, tag = 'scoped memory for tpu_custom_call.1']
    #allocation4 [shape = 's32[1]{0}', space=sflag, size = 0x4, scoped, tag = 'scoped memory for tpu_custom_call.1']
    #allocation5 [shape = 'u8[16384]{0}', space=vmem, size = 0x4000, scoped, tag = 'input window, operand 6, single buffered']
    #allocation6 [shape = 's32[1]{0}', space=sflag, size = 0x4, scoped, tag = 'scoped memory for tpu_custom_call.1']
    #allocation7 [shape = 'u8[4096]{0}', space=vmem, size = 0x1000, scoped, tag = 'output window, operand 0, single buffered']
    %16 = vsyncpa [#allocation3], 0
    %17 = vsyncpa [#allocation6], 0
    %18 = vsyncpa [#allocation4], 0
    // Predicated region
    $region2: #{tpu_custom_call.1} parent=1 // pred_check
      _
    $region3: #{tpu_custom_call.1} parent=1 // pred_check_branch
      %20 = sbr.rel (0) target = $region5
    $region4: #{tpu_custom_call.1} parent=1 // pred_region
      _
    $region5: #{tpu_custom_call.1} parent=1 // pred_fallthru
      _
    // Predicated region
    $region6: #{tpu_custom_call.1} parent=1 // pred_check
      _
    $region7: #{tpu_custom_call.1} parent=1 // pred_check_branch
      %22 = sbr.rel (0) target = $region9
    $region8: #{tpu_custom_call.1} parent=1 // pred_region
      _
    $region9: #{tpu_custom_call.1} parent=1 // pred_fallthru
      _
    // Predicated region
    $region10: #{tpu_custom_call.1} parent=1 // pred_check
      _
    $region11: #{tpu_custom_call.1} parent=1 // pred_check_branch
      %24 = sbr.rel (0) target = $region13
    $region12: #{tpu_custom_call.1} parent=1 // pred_region
      _
    $region13: #{tpu_custom_call.1} parent=1 // pred_fallthru
      _
    // Predicated region
    $region14: #{tpu_custom_call.1} parent=1 // pred_check
      _
    $region15: #{tpu_custom_call.1} parent=1 // pred_check_branch
      %26 = sbr.rel (0) target = $region17
    $region16: #{tpu_custom_call.1} parent=1 // pred_region
      _
    $region17: #{tpu_custom_call.1} parent=1 // pred_fallthru
      _
    // Predicated region
    $region18: #{tpu_custom_call.1} parent=1 // pred_check
      _
    $region19: #{tpu_custom_call.1} parent=1 // pred_check_branch
      %28 = sbr.rel (0) target = $region21
    $region20: #{tpu_custom_call.1} parent=1 // pred_region
      %30 = vsyncadd [#allocation3], 0
      %s31 = sshll.u32 %s4, 4
      %s32 = int_to_ptr.hbm [resolvable:$true] %s31
      %s33 = sshll.u32 [#allocation2], 4
      %s34 = int_to_ptr.vmem [resolvable:$true] %s33
      %39 = dma.hbm_to_vmem [thread:$0]  %s32, 512, %s34, [#allocation3], 128, 128, 8
    $region21: #{tpu_custom_call.1} parent=1 // pred_fallthru
      _
    // Predicated region
    $region22: #{tpu_custom_call.1} parent=1 // pred_check
      _
    $region23: #{tpu_custom_call.1} parent=1 // pred_check_branch
      %41 = sbr.rel (0) target = $region25
    $region24: #{tpu_custom_call.1} parent=1 // pred_region
      _
    $region25: #{tpu_custom_call.1} parent=1 // pred_fallthru
      _
    // Predicated region
    $region26: #{tpu_custom_call.1} parent=1 // pred_check
      _
    $region27: #{tpu_custom_call.1} parent=1 // pred_check_branch
      %43 = sbr.rel (0) target = $region29
    $region28: #{tpu_custom_call.1} parent=1 // pred_region
      %45 = vsyncadd [#allocation6], 0
      %s46 = sshll.u32 %s6, 4
      %s47 = int_to_ptr.hbm [resolvable:$true] %s46
      %s48 = sshll.u32 [#allocation5], 4
      %s49 = int_to_ptr.vmem [resolvable:$true] %s48
      %54 = dma.hbm_to_vmem [thread:$0]  %s47, 512, %s49, [#allocation6], 128, 128, 8
    $region29: #{tpu_custom_call.1} parent=1 // pred_fallthru
      _
    // Predicated region
    $region30: #{tpu_custom_call.1} parent=1 // pred_check
      _
    $region31: #{tpu_custom_call.1} parent=1 // pred_check_branch
      %56 = sbr.rel (0) target = $region33
    $region32: #{tpu_custom_call.1} parent=1 // pred_region
      _
    $region33: #{tpu_custom_call.1} parent=1 // pred_fallthru
      _
    // Predicated region
    $region34: #{tpu_custom_call.1} parent=1 // pred_check
      _
    $region35: #{tpu_custom_call.1} parent=1 // pred_check_branch
      %58 = sbr.rel (0) target = $region37
    $region36: #{tpu_custom_call.1} parent=1 // pred_region
      %60 = dma.done [#allocation3], 512
    $region37: #{tpu_custom_call.1} parent=1 // pred_fallthru
      _
    // Predicated region
    $region38: #{tpu_custom_call.1} parent=1 // pred_check
      _
    $region39: #{tpu_custom_call.1} parent=1 // pred_check_branch
      %62 = sbr.rel (0) target = $region41
    $region40: #{tpu_custom_call.1} parent=1 // pred_region
      %64 = dma.done [#allocation6], 512
    $region41: #{tpu_custom_call.1} parent=1 // pred_fallthru
      _
    %v65 = vld [vmem:[%s0] sm:$0xff]
    %v66 = vld [vmem:[%s2] sm:$0xf]
    %v67 = vld [vmem:[%s3] sm:$0x1]
    %v69 = vperm.slane %v67, 0
    %vm71 = vcmask 31744
    %v73 = vsel %vm71, %v65, 0
    %vm75 = vcmask 1043456
    %v77 = vsel %vm75, %v66, 0
    %79 = vmatpush.msra.mxu0 0.0
    %80 = vmatpush.msra.mxu0 0.0
    %81 = vmatpush.msra.mxu0 0.0
    %82 = vmatpush.msra.mxu0 0.0
    %83 = vmatpush.msra.mxu0 0.0
    %84 = vmatpush.msra.mxu0 0.0
    %85 = vmatpush.msra.mxu0 0.0
    %86 = vmatpush.msra.mxu0 0.0
    %87 = vmatpush.msra.mxu0 0.0
    %88 = vmatpush.msra.mxu0 0.0
    %89 = vmatpush.msra.mxu0 0.0
    %90 = vmatpush.msra.mxu0 0.0
    %91 = vmatpush.msra.mxu0 0.0
    %92 = vmatpush.msra.mxu0 0.0
    %93 = vmatpush.msra.mxu0 0.0
    %94 = vmatpush.msra.mxu0 %v77
    %95 = vmatmul.f32.gmra.mxu0 %v73
    %v96 = vpop.f32.mrf.mxu0
    %v97 = vadd.f32 %v69, %v96
    %98 = vdwg.mxu0
    %v99 = vmax.f32 %v97, 0.0
    %v100 = vld [vmem:[#allocation2] sm:$0xff]
    %v101 = vld [vmem:[#allocation2 + $0x8] sm:$0xff]
    %v102 = vld [vmem:[#allocation2 + $0x10] sm:$0xff]
    %v103 = vld [vmem:[#allocation2 + $0x18] sm:$0xff]
    %v104 = vld [vmem:[%s5] sm:$0x1]
    %v106 = vperm.slane %v104, 0
    %vm108 = vcmask 261120
    %v110 = vsel %vm108, %v99, 0
    %112 = vmatpush.msra.mxu0 0.0
    %113 = vmatpush.msra.mxu0 0.0
    %114 = vmatpush.msra.mxu0 0.0
    %115 = vmatpush.msra.mxu0 0.0
    %116 = vmatpush.msra.mxu0 0.0
    %117 = vmatpush.msra.mxu0 0.0
    %118 = vmatpush.msra.mxu0 0.0
    %119 = vmatpush.msra.mxu0 0.0
    %120 = vmatpush.msra.mxu0 0.0
    %121 = vmatpush.msra.mxu0 0.0
    %122 = vmatpush.msra.mxu0 0.0
    %123 = vmatpush.msra.mxu0 0.0
    %124 = vmatpush.msra.mxu0 %v103
    %125 = vmatpush.msra.mxu0 %v102
    %126 = vmatpush.msra.mxu0 %v101
    %127 = vmatpush.msra.mxu0 %v100
    %128 = vmatmul.f32.gmra.mxu0 %v110
    %v129 = vpop.f32.mrf.mxu0
    %v130 = vadd.f32 %v106, %v129
    %131 = vdwg.mxu0
    %v132 = vmax.f32 %v130, 0.0
    %v133 = vld [vmem:[#allocation5] sm:$0xff]
    %v134 = vld [vmem:[#allocation5 + $0x8] sm:$0xff]
    %v135 = vld [vmem:[#allocation5 + $0x10] sm:$0xff]
    %v136 = vld [vmem:[#allocation5 + $0x18] sm:$0xff]
    %v137 = vld [vmem:[%s7] sm:$0x1]
    %v139 = vperm.slane %v137, 0
    %v142 = vsel %vm108, %v132, 0
    %144 = vmatpush.msra.mxu0 0.0
    %145 = vmatpush.msra.mxu0 0.0
    %146 = vmatpush.msra.mxu0 0.0
    %147 = vmatpush.msra.mxu0 0.0
    %148 = vmatpush.msra.mxu0 0.0
    %149 = vmatpush.msra.mxu0 0.0
    %150 = vmatpush.msra.mxu0 0.0
    %151 = vmatpush.msra.mxu0 0.0
    %152 = vmatpush.msra.mxu0 0.0
    %153 = vmatpush.msra.mxu0 0.0
    %154 = vmatpush.msra.mxu0 0.0
    %155 = vmatpush.msra.mxu0 0.0
    %156 = vmatpush.msra.mxu0 %v136
    %157 = vmatpush.msra.mxu0 %v135
    %158 = vmatpush.msra.mxu0 %v134
    %159 = vmatpush.msra.mxu0 %v133
    %160 = vmatmul.f32.gmra.mxu0 %v142
    %v161 = vpop.f32.mrf.mxu0
    %v162 = vadd.f32 %v139, %v161
    %163 = vdwg.mxu0
    %164 = vmax.xlane.f32.xlu0 %v162
    %v165 = vpop.xlane.xlu0 %164
    %v166 = vsub.f32 %v162, %v165
    %v167 = vmul.f32 %v166, 1.442695
    %v168 = vpow.pop %v167
    %169 = vadd.xlane.f32.xlu0 %v168
    %v170 = vpop.xlane.xlu0 %169
    %v171 = vrcp.pop %v170
    %v172 = vmul.f32 %v170, %v171
    %v173 = vsub.f32 1.0, %v172
    %v174 = vmul.f32 %v171, %v173
    %v175 = vadd.f32 %v171, %v174
    %vm176 = vweird.f32 %v170
    %vm177 = vweird.f32 %v171
    %vm178 = vmor %vm176, %vm177
    %v179 = vsel %vm178, %v171, %v175
    %v180 = vand.u32 2147483647, %v170
    %vm181 = vcmp.eq.f32.partialorder %v180, 8.507059e+37
    %v182 = vand.u32 %v170, 2147483648
    %v183 = vor.u32 1.1754944e-38, %v182
    %v184 = vsel %vm181, %v183, %v179
    %v185 = vmul.f32 %v168, %v184
    %186 = vst [vmem:[#allocation7] sm:$0xff] %v185
    %v187 = vld [vmem:[%s1] sm:$0xff]
    %v188 = vlaneseq
    %v189 = vshrl.u32 %v188, 7
    %v190 = vadd.s32 %v189, 8
    %v191 = vadd.s32 %v189, 16
    %v192 = vadd.s32 %v189, 24
    %v193 = vadd.s32 %v189, 32
    %v194 = vadd.s32 %v189, 40
    %v195 = vadd.s32 %v189, 48
    %v196 = vadd.s32 %v189, 56
    %v197 = vadd.s32 %v189, 64
    %v198 = vadd.s32 %v189, 72
    %v199 = vadd.s32 %v189, 80
    %v200 = vadd.s32 %v189, 88
    %v201 = vadd.s32 %v189, 96
    %v202 = vadd.s32 %v189, 104
    %v203 = vadd.s32 %v189, 112
    %v204 = vadd.s32 %v189, 120
    %v205 = vlaneseq
    %v206 = vand.u32 %v205, 127
    %vm207 = vcmp.le.s32.totalorder %v189, %v206
    %vm208 = vcmp.le.s32.totalorder %v190, %v206
    %vm209 = vcmp.le.s32.totalorder %v191, %v206
    %vm210 = vcmp.le.s32.totalorder %v192, %v206
    %vm211 = vcmp.le.s32.totalorder %v193, %v206
    %vm212 = vcmp.le.s32.totalorder %v194, %v206
    %vm213 = vcmp.le.s32.totalorder %v195, %v206
    %vm214 = vcmp.le.s32.totalorder %v196, %v206
    %vm215 = vcmp.le.s32.totalorder %v197, %v206
    %vm216 = vcmp.le.s32.totalorder %v198, %v206
    %vm217 = vcmp.le.s32.totalorder %v199, %v206
    %vm218 = vcmp.le.s32.totalorder %v200, %v206
    %vm219 = vcmp.le.s32.totalorder %v201, %v206
    %vm220 = vcmp.le.s32.totalorder %v202, %v206
    %vm221 = vcmp.le.s32.totalorder %v203, %v206
    %vm222 = vcmp.le.s32.totalorder %v204, %v206
    %v223 = vsel %vm207, 1, 0
    %v224 = vsel %vm208, 1, 0
    %v225 = vsel %vm209, 1, 0
    %v226 = vsel %vm210, 1, 0
    %v227 = vsel %vm211, 1, 0
    %v228 = vsel %vm212, 1, 0
    %v229 = vsel %vm213, 1, 0
    %v230 = vsel %vm214, 1, 0
    %v231 = vsel %vm215, 1, 0
    %v232 = vsel %vm216, 1, 0
    %v233 = vsel %vm217, 1, 0
    %v234 = vsel %vm218, 1, 0
    %v235 = vsel %vm219, 1, 0
    %v236 = vsel %vm220, 1, 0
    %v237 = vsel %vm221, 1, 0
    %v238 = vsel %vm222, 1, 0
    %v239 = vcvt.s32.f32 %v223
    %v240 = vcvt.s32.f32 %v224
    %v241 = vcvt.s32.f32 %v225
    %v242 = vcvt.s32.f32 %v226
    %v243 = vcvt.s32.f32 %v227
    %v244 = vcvt.s32.f32 %v228
    %v245 = vcvt.s32.f32 %v229
    %v246 = vcvt.s32.f32 %v230
    %v247 = vcvt.s32.f32 %v231
    %v248 = vcvt.s32.f32 %v232
    %v249 = vcvt.s32.f32 %v233
    %v250 = vcvt.s32.f32 %v234
    %v251 = vcvt.s32.f32 %v235
    %v252 = vcvt.s32.f32 %v236
    %v253 = vcvt.s32.f32 %v237
    %v254 = vcvt.s32.f32 %v238
    %255 = vmatpush.msra.mxu0 %v254
    %256 = vmatpush.msra.mxu0 %v253
    %257 = vmatpush.msra.mxu0 %v252
    %258 = vmatpush.msra.mxu0 %v251
    %259 = vmatpush.msra.mxu0 %v250
    %260 = vmatpush.msra.mxu0 %v249
    %261 = vmatpush.msra.mxu0 %v248
    %262 = vmatpush.msra.mxu0 %v247
    %263 = vmatpush.msra.mxu0 %v246
    %264 = vmatpush.msra.mxu0 %v245
    %265 = vmatpush.msra.mxu0 %v244
    %266 = vmatpush.msra.mxu0 %v243
    %267 = vmatpush.msra.mxu0 %v242
    %268 = vmatpush.msra.mxu0 %v241
    %269 = vmatpush.msra.mxu0 %v240
    %270 = vmatpush.msra.mxu0 %v239
    %271 = vmatmul.f32.gmra.mxu0 %v185
    %v272 = vpop.f32.mrf.mxu0
    %v273 = vadd.f32 0.0, %v272
    %274 = vdwg.mxu0
    %276 = vset.pattern.permute.xlu0 0
    %277 = vperm.xlu0 %276, %v187
    %v278 = vpop.permute.xlu0 %277
    %vm280 = vcmp.le.f32.partialorder %v273, %v278
    %v281 = vsel %vm280, 1, 0
    %v282 = vcvt.s32.f32 %v281
    %283 = vadd.xlane.f32.xlu0 %v282
    %v284 = vpop.xlane.xlu0 %283
    %v285 = vcvt.f32.s32.to.zero.pseudo %v284
    %vm286 = vcmp.lt.s32.totalorder %v285, 1
    %v287 = vsel %vm286, %v285, 1
    %vm288 = vcmask 7168
    %289 = vst.msk [vmem:[%s9] sm:$0xff] %vm288, %v287
    %v290 = vlog2.pop %v170
    %v291 = vmul.f32 %v290, 0.6931472
    %v292 = vsub.f32 %v166, %v291
    %vm293 = vcmp.eq.s32.totalorder %v206, %v287
    %v294 = vsel %vm293, %v292, 0.0
    %295 = vadd.xlane.f32.xlu0 %v294
    %v296 = vpop.xlane.xlu0 %295
    %297 = vst.msk [vmem:[%s10] sm:$0xff] %vm288, %v296
    // Predicated region
    $region42: #{tpu_custom_call.1} parent=1 // pred_check
      _
    $region43: #{tpu_custom_call.1} parent=1 // pred_check_branch
      %299 = sbr.rel (0) target = $region45
    $region44: #{tpu_custom_call.1} parent=1 // pred_region
      %301 = vsyncadd [#allocation4], 0
      %s303 = sshll.u32 [#allocation7], 4
      %s304 = int_to_ptr.vmem [resolvable:$true] %s303
      %s305 = sshll.u32 %s8, 4
      %s306 = int_to_ptr.hbm [resolvable:$true] %s305
      %308 = dma.vmem_to_hbm [thread:$0]  %s304, 128, %s306, [#allocation4]
    $region45: #{tpu_custom_call.1} parent=1 // pred_fallthru
      _
    // Predicated region
    $region46: #{tpu_custom_call.1} parent=1 // pred_check
      _
    $region47: #{tpu_custom_call.1} parent=1 // pred_check_branch
      %310 = sbr.rel (0) target = $region49
    $region48: #{tpu_custom_call.1} parent=1 // pred_region
      _
    $region49: #{tpu_custom_call.1} parent=1 // pred_fallthru
      _
    // Predicated region
    $region50: #{tpu_custom_call.1} parent=1 // pred_check
      _
    $region51: #{tpu_custom_call.1} parent=1 // pred_check_branch
      %312 = sbr.rel (0) target = $region53
    $region52: #{tpu_custom_call.1} parent=1 // pred_region
      _
    $region53: #{tpu_custom_call.1} parent=1 // pred_fallthru
      _
    // Predicated region
    $region54: #{tpu_custom_call.1} parent=1 // pred_check
      _
    $region55: #{tpu_custom_call.1} parent=1 // pred_check_branch
      %314 = sbr.rel (0) target = $region57
    $region56: #{tpu_custom_call.1} parent=1 // pred_region
      %316 = dma.done [#allocation4], 128
    $region57: #{tpu_custom_call.1} parent=1 // pred_fallthru
      _
    // Predicated region
    $region58: #{tpu_custom_call.1} parent=1 // pred_check
      _
    $region59: #{tpu_custom_call.1} parent=1 // pred_check_branch
      %318 = sbr.rel (0) target = $region61
    $region60: #{tpu_custom_call.1} parent=1 // pred_region
      _
    $region61: #{tpu_custom_call.1} parent=1 // pred_fallthru
      _
    // Predicated region
    $region62: #{tpu_custom_call.1} parent=1 // pred_check
      _
    $region63: #{tpu_custom_call.1} parent=1 // pred_check_branch
      %320 = sbr.rel (0) target = $region65
    $region64: #{tpu_custom_call.1} parent=1 // pred_region
      _
    $region65: #{tpu_custom_call.1} parent=1 // pred_fallthru
      _
    %321 = vsyncpa [#allocation3], 1
    %322 = vsyncpa [#allocation6], 1
    %323 = vsyncpa [#allocation4], 1

</llo_original>
